<compile_context>
chip_gen: v6e
topology: v6e:2x2x1
jax: 0.10.0
libtpu: 0.0.40
codegen_flags: <defaults>
</compile_context>

<pallas_src>
import functools

import jax
import jax.numpy as jnp
from jax.experimental import pallas as pl
from jax.experimental.pallas import tpu as pltpu

LANE = 128
_NEG_INF = jnp.float32(-1e30)
_MAX_TILE = 1024        # max A tile (rows and contraction) in the tiled path
_MIN_TILE = 256         # n is padded to a multiple of this in the tiled path


def _round_up(v, m):
    return (v + m - 1) // m * m


def _pad2d(a, rows, cols, dtype):
    r, c = a.shape
    return jnp.pad(a, ((0, rows - r), (0, cols - c))).astype(dtype)


def _vmem_capacity_bytes():
    try:
        return int(pltpu.get_tpu_info().vmem_capacity_bytes)
    except Exception:
        return 64 << 20                 # conservative (v7x per-TC VMEM)


def _vmem_limit_bytes():
    cap = _vmem_capacity_bytes()
    return int(min(cap * 3 // 4, 100 << 20))


def _fused_max_nodes():
    # v5e/v6e (128 MiB VMEM): up to ~3072 nodes fully resident.
    # v7x (64 MiB, 2 TCs): lower cutoff; larger graphs go to the tiled path
    # whose "parallel" row axis shards across both TensorCores.
    return 3072 if _vmem_capacity_bytes() >= (100 << 20) else 2048


def _pick_tile(n_pad):
    t = _MAX_TILE
    while t > _MIN_TILE and n_pad % t != 0:
        t //= 2
    return min(t, n_pad)


# ---------------------------------------------------------------------------
# Graph operands: int8 (A + I) counts + D^-1/2 (normalization folded in-kernel)
# ---------------------------------------------------------------------------
def build_graph_operands(edge_index, num_nodes, n_pad):
    src = edge_index[0]
    dst = edge_index[1]
    adj = jnp.zeros((num_nodes, num_nodes), jnp.int32)
    adj = adj.at[dst, src].add(1)                         # duplicate edges accumulate
    adj = adj + jnp.eye(num_nodes, dtype=jnp.int32)       # self loops
    deg = jnp.sum(adj, axis=1).astype(jnp.float32)
    dinv = jnp.where(deg > 0, jax.lax.rsqrt(deg), 0.0)
    a_i8 = _pad2d(adj, n_pad, n_pad, jnp.int8)            # 1 byte / element in HBM
    dinv_p = _pad2d(dinv.reshape(-1, 1), n_pad, 1, jnp.float32)
    return a_i8, dinv_p


# ---------------------------------------------------------------------------
# Fully-fused kernel (small graphs: everything resident in VMEM, A read once)
# ---------------------------------------------------------------------------
def _gcn_fused_kernel(a_ref, dinv_ref, x_ref, w1_ref, b1_ref, w2_ref, b2_ref,
                      lmask_ref, o_ref):
    # A is (A + I) edge counts (int8); D^-1/2 applied on the fly.
    a = a_ref[...].astype(jnp.float32).astype(jnp.bfloat16)   # cast once, reuse twice
    dinv = dinv_ref[...]                                       # [Np, 1] f32
    # layer 1: H = relu(D^-1/2 (A+I) (D^-1/2 (X @ W1^T)) + b1)
    xw1 = jnp.dot(x_ref[...], w1_ref[...], preferred_element_type=jnp.float32)
    xw1 = (xw1 * dinv).astype(jnp.bfloat16)
    h = jnp.dot(a, xw1, preferred_element_type=jnp.float32) * dinv
    h = jnp.maximum(h + b1_ref[...], 0.0)
    # layer 2
    hw2 = jnp.dot(h.astype(jnp.bfloat16), w2_ref[...],
                  preferred_element_type=jnp.float32)
    hw2 = (hw2 * dinv).astype(jnp.bfloat16)
    z = jnp.dot(a, hw2, preferred_element_type=jnp.float32) * dinv
    z = z + b2_ref[...] + lmask_ref[...]                       # -inf on padded lanes
    # row-wise log_softmax (f32)
    m = jnp.max(z, axis=1, keepdims=True)
    s = z - m
    lse = jnp.log(jnp.sum(jnp.exp(s), axis=1, keepdims=True))
    o_ref[...] = (s - lse).astype(o_ref.dtype)


def gcn_forward_fused(a_i8, dinv, x, params):
    n, f_in = x.shape
    n_pad = a_i8.shape[0]
    hid = params["w1"].shape[0]
    f_out = params["w2"].shape[0]
    fi_pad = _round_up(f_in, LANE)
    h_pad = _round_up(hid, LANE)
    fo_pad = _round_up(f_out, LANE)

    x_p = _pad2d(x, n_pad, fi_pad, jnp.bfloat16)
    w1_p = _pad2d(params["w1"].T, fi_pad, h_pad, jnp.bfloat16)
    b1_p = _pad2d(params["b1"].reshape(1, -1), 1, h_pad, jnp.float32)
    w2_p = _pad2d(params["w2"].T, h_pad, fo_pad, jnp.bfloat16)
    b2_p = _pad2d(params["b2"].reshape(1, -1), 1, fo_pad, jnp.float32)
    lmask = jnp.where(jnp.arange(fo_pad) < f_out, 0.0, _NEG_INF)
    lmask = lmask.astype(jnp.float32).reshape(1, fo_pad)

    vmem = pl.BlockSpec(memory_space=pltpu.MemorySpace.VMEM)
    out = pl.pallas_call(
        _gcn_fused_kernel,
        out_shape=jax.ShapeDtypeStruct((n_pad, fo_pad), jnp.float32),
        in_specs=[vmem] * 8,
        out_specs=vmem,
        compiler_params=pltpu.CompilerParams(
            vmem_limit_bytes=_vmem_limit_bytes()),
    )(a_i8, dinv, x_p, w1_p, b1_p, w2_p, b2_p, lmask)
    return out[:n, :f_out]


# ---------------------------------------------------------------------------
# Tiled path (large graphs): per-layer X@W kernel + tiled A@XW accumulation
# ---------------------------------------------------------------------------
def _xw_kernel(x_ref, w_ref, dinv_ref, o_ref):
    xw = jnp.dot(x_ref[...], w_ref[...], preferred_element_type=jnp.float32)
    o_ref[...] = (xw * dinv_ref[...]).astype(o_ref.dtype)     # fold src-side D^-1/2


def _xw_tiled(x_p, w_p, dinv_p, tile_m, vmem_limit):
    n_pad, fi_pad = x_p.shape
    fo_pad = w_p.shape[1]
    return pl.pallas_call(
        _xw_kernel,
        out_shape=jax.ShapeDtypeStruct((n_pad, fo_pad), jnp.bfloat16),
        grid=(n_pad // tile_m,),
        in_specs=[pl.BlockSpec((tile_m, fi_pad), lambda i: (i, 0)),
                  pl.BlockSpec((fi_pad, fo_pad), lambda i: (0, 0)),
                  pl.BlockSpec((tile_m, 1), lambda i: (i, 0))],
        out_specs=pl.BlockSpec((tile_m, fo_pad), lambda i: (i, 0)),
        compiler_params=pltpu.CompilerParams(
            dimension_semantics=("parallel",),
            vmem_limit_bytes=vmem_limit),
    )(x_p, w_p, dinv_p)


def _agg_kernel(a_ref, xw_ref, dinv_ref, b_ref, lmask_ref, o_ref, acc_ref, *,
                tile_k, xw_resident, apply_relu, apply_log_softmax):
    k = pl.program_id(1)

    @pl.when(k == 0)
    def _():
        acc_ref[...] = jnp.zeros_like(acc_ref)

    a = a_ref[...].astype(jnp.float32).astype(jnp.bfloat16)   # int8 counts -> bf16
    if xw_resident:
        start = pl.multiple_of(k * tile_k, tile_k)
        xw = xw_ref[pl.ds(start, tile_k), :]
    else:
        xw = xw_ref[...]
    acc_ref[...] += jnp.dot(a, xw, preferred_element_type=jnp.float32)

    @pl.when(k == pl.num_programs(1) - 1)
    def _():
        h = acc_ref[...] * dinv_ref[...] + b_ref[...]          # dst-side D^-1/2 + bias
        if apply_relu:
            h = jnp.maximum(h, 0.0)
        if apply_log_softmax:
            z = h + lmask_ref[...]                             # -inf on padded lanes
            m = jnp.max(z, axis=1, keepdims=True)
            s = z - m
            lse = jnp.log(jnp.sum(jnp.exp(s), axis=1, keepdims=True))
            h = s - lse
        o_ref[...] = h.astype(o_ref.dtype)


def _agg_tiled(a_p, xw_p, dinv_p, b_p, lmask_p, *, tile_m, tile_k, vmem_limit,
               apply_relu, apply_log_softmax, out_dtype):
    n_pad = a_p.shape[0]
    fo_pad = xw_p.shape[1]
    odt = jnp.dtype(out_dtype).itemsize

    # Keep the whole XW operand VMEM-resident (constant index_map -> fetched
    # once) when it fits the budget; otherwise stream it per contraction tile.
    xw_bytes = n_pad * fo_pad * 2
    in_flight = (2 * xw_bytes                       # resident XW (double-buffered)
                 + 2 * tile_m * tile_k              # A int8 tiles (double-buffered)
                 + tile_m * tile_k * 6              # in-kernel A cast temps (f32+bf16)
                 + tile_m * fo_pad * 4              # f32 accumulator
                 + 2 * tile_m * fo_pad * odt)       # output buffers
    xw_resident = in_flight <= int(vmem_limit * 0.9)

    if xw_resident:
        xw_spec = pl.BlockSpec((n_pad, fo_pad), lambda i, k: (0, 0))
    else:
        xw_spec = pl.BlockSpec((tile_k, fo_pad), lambda i, k: (k, 0))

    kernel = functools.partial(_agg_kernel, tile_k=tile_k,
                               xw_resident=xw_resident,
                               apply_relu=apply_relu,
                               apply_log_softmax=apply_log_softmax)
    return pl.pallas_call(
        kernel,
        out_shape=jax.ShapeDtypeStruct((n_pad, fo_pad), out_dtype),
        grid=(n_pad // tile_m, n_pad // tile_k),
        in_specs=[pl.BlockSpec((tile_m, tile_k), lambda i, k: (i, k)),
                  xw_spec,
                  pl.BlockSpec((tile_m, 1), lambda i, k: (i, 0)),
                  pl.BlockSpec((1, fo_pad), lambda i, k: (0, 0)),
                  pl.BlockSpec((1, fo_pad), lambda i, k: (0, 0))],
        out_specs=pl.BlockSpec((tile_m, fo_pad), lambda i, k: (i, 0)),
        scratch_shapes=[pltpu.VMEM((tile_m, fo_pad), jnp.float32)],
        compiler_params=pltpu.CompilerParams(
            dimension_semantics=("parallel", "arbitrary"),
            vmem_limit_bytes=vmem_limit),
    )(a_p, xw_p, dinv_p, b_p, lmask_p)


def gcn_forward_tiled(a_i8, dinv, x, params):
    n, f_in = x.shape
    n_pad = a_i8.shape[0]
    hid = params["w1"].shape[0]
    f_out = params["w2"].shape[0]
    fi_pad = _round_up(f_in, LANE)
    h_pad = _round_up(hid, LANE)
    fo_pad = _round_up(f_out, LANE)

    tile = _pick_tile(n_pad)
    vmem_limit = _vmem_limit_bytes()

    x_p = _pad2d(x, n_pad, fi_pad, jnp.bfloat16)
    w1_p = _pad2d(params["w1"].T, fi_pad, h_pad, jnp.bfloat16)
    b1_p = _pad2d(params["b1"].reshape(1, -1), 1, h_pad, jnp.float32)
    w2_p = _pad2d(params["w2"].T, h_pad, fo_pad, jnp.bfloat16)
    b2_p = _pad2d(params["b2"].reshape(1, -1), 1, fo_pad, jnp.float32)
    zeros1 = jnp.zeros((1, h_pad), jnp.float32)
    lmask = jnp.where(jnp.arange(fo_pad) < f_out, 0.0, _NEG_INF)
    lmask = lmask.astype(jnp.float32).reshape(1, fo_pad)

    # TODO(synk): fold the X@W projection into the aggregation kernel
    # (emit_pipeline) to drop the XW round-trip once A-traffic is optimized.
    xw1 = _xw_tiled(x_p, w1_p, dinv, tile, vmem_limit)
    h = _agg_tiled(a_i8, xw1, dinv, b1_p, zeros1, tile_m=tile, tile_k=tile,
                   vmem_limit=vmem_limit, apply_relu=True,
                   apply_log_softmax=False, out_dtype=jnp.bfloat16)
    hw2 = _xw_tiled(h, w2_p, dinv, tile, vmem_limit)
    out = _agg_tiled(a_i8, hw2, dinv, b2_p, lmask, tile_m=tile, tile_k=tile,
                     vmem_limit=vmem_limit, apply_relu=False,
                     apply_log_softmax=True, out_dtype=jnp.float32)
    return out[:n, :f_out]


# ---------------------------------------------------------------------------
# Dispatch + pure-JAX reference
# ---------------------------------------------------------------------------
def gcn_forward(x, edge_index, params, *, force_tiled=False):
    n = x.shape[0]
    if force_tiled or n > _fused_max_nodes():
        n_pad = _round_up(max(n, _MIN_TILE), _MIN_TILE)
        a_i8, dinv = build_graph_operands(edge_index, n, n_pad)
        return gcn_forward_tiled(a_i8, dinv, x, params)
    n_pad = _round_up(n, LANE)
    a_i8, dinv = build_graph_operands(edge_index, n, n_pad)
    return gcn_forward_fused(a_i8, dinv, x, params)


def _reference_forward(x, edge_index, params):
    n = x.shape[0]
    src, dst = edge_index[0], edge_index[1]
    adj = jnp.zeros((n, n), jnp.float32).at[dst, src].add(1.0)
    adj = adj + jnp.eye(n, dtype=jnp.float32)
    deg = jnp.sum(adj, axis=1)
    dinv = jnp.where(deg > 0, jax.lax.rsqrt(deg), 0.0)
    a_hat = dinv[:, None] * adj * dinv[None, :]
    h = jnp.maximum(a_hat @ (x @ params["w1"].T) + params["b1"], 0.0)
    z = a_hat @ (h @ params["w2"].T) + params["b2"]
    return jax.nn.log_softmax(z, axis=1)


# ---------------------------------------------------------------------------
# Main
# ---------------------------------------------------------------------------
if __name__ == "__main__":
    N = 8
    INPUT_DIM = 16
    HIDDEN_DIM = 32
    OUTPUT_DIM = 8

    key = jax.random.PRNGKey(0)
    kx, kw1, kb1, kw2, kb2 = jax.random.split(key, 5)

    x = jax.random.normal(kx, (N, INPUT_DIM), dtype=jnp.float32)

    # Deterministic bidirectional ring graph, edge_index shape [2, 2N]
    idx = jnp.arange(N)
    src = jnp.concatenate([idx, (idx + 1) % N])
    dst = jnp.concatenate([(idx + 1) % N, idx])
    edge_index = jnp.stack([src, dst], axis=0).astype(jnp.int32)

    params = {
        "w1": jax.random.normal(kw1, (HIDDEN_DIM, INPUT_DIM), jnp.float32)
        * (1.0 / jnp.sqrt(INPUT_DIM)),
        "b1": jax.random.normal(kb1, (HIDDEN_DIM,), jnp.float32) * 0.01,
        "w2": jax.random.normal(kw2, (OUTPUT_DIM, HIDDEN_DIM), jnp.float32)
        * (1.0 / jnp.sqrt(HIDDEN_DIM)),
        "b2": jax.random.normal(kb2, (OUTPUT_DIM,), jnp.float32) * 0.01,
    }

    # Primary (fused, single pallas_call) path
    out = gcn_forward(x, edge_index, params)
    out = jax.block_until_ready(out)
    assert out.shape == (N, OUTPUT_DIM)

    # log_softmax rows must exponentiate-sum to ~1
    row_sums = jnp.exp(out).sum(axis=1)
    assert bool(jnp.all(jnp.abs(row_sums - 1.0) < 1e-4))

    # Tiled large-graph path must agree with the fused path (bf16 tolerance)
    out_tiled = jax.block_until_ready(
        gcn_forward(x, edge_index, params, force_tiled=True))
    assert bool(jnp.max(jnp.abs(out_tiled - out)) < 3e-2)

    # Agreement with the pure-JAX f32 reference (bf16 matmul tolerance)
    ref = _reference_forward(x, edge_index, params)
    assert bool(jnp.max(jnp.abs(out - ref)) < 0.1)

    print("KERNEL_OK")
</pallas_src>

<mosaic_0001>
module attributes {stable_mosaic.version = 11 : i64} {
  func.func @_gcn_fused_kernel(%arg0: memref<128x128xi8, #tpu.memory_space<vmem>>, %arg1: memref<128x1xf32, #tpu.memory_space<vmem>>, %arg2: memref<128x128xbf16, #tpu.memory_space<vmem>>, %arg3: memref<128x128xbf16, #tpu.memory_space<vmem>>, %arg4: memref<1x128xf32, #tpu.memory_space<vmem>>, %arg5: memref<128x128xbf16, #tpu.memory_space<vmem>>, %arg6: memref<1x128xf32, #tpu.memory_space<vmem>>, %arg7: memref<1x128xf32, #tpu.memory_space<vmem>>, %arg8: memref<128x128xf32, #tpu.memory_space<vmem>>) attributes {dimension_semantics = [], scalar_prefetch = 0 : i64, scratch_operands = 0 : i64, tpu.core_type = #tpu.core_type<tc>} {
    %c0 = arith.constant 0 : index
    %c0_0 = arith.constant 0 : index
    %0 = vector.load %arg0[%c0, %c0_0] : memref<128x128xi8, #tpu.memory_space<vmem>>, vector<128x128xi8>
    %1 = arith.sitofp %0 : vector<128x128xi8> to vector<128x128xf32>
    %2 = arith.truncf %1 : vector<128x128xf32> to vector<128x128xbf16>
    %c0_1 = arith.constant 0 : index
    %c0_2 = arith.constant 0 : index
    %3 = vector.load %arg1[%c0_1, %c0_2] : memref<128x1xf32, #tpu.memory_space<vmem>>, vector<128x1xf32>
    %c0_3 = arith.constant 0 : index
    %c0_4 = arith.constant 0 : index
    %4 = vector.load %arg2[%c0_3, %c0_4] : memref<128x128xbf16, #tpu.memory_space<vmem>>, vector<128x128xbf16>
    %c0_5 = arith.constant 0 : index
    %c0_6 = arith.constant 0 : index
    %5 = vector.load %arg3[%c0_5, %c0_6] : memref<128x128xbf16, #tpu.memory_space<vmem>>, vector<128x128xbf16>
    %cst = arith.constant dense<0.000000e+00> : vector<128x128xf32>
    %6 = tpu.matmul %4, %5, %cst {dimension_numbers = #tpu.dot_dimension_numbers<[1], [0], [0], [1], [0, 0, 1, 1], [], []>} : vector<128x128xbf16>, vector<128x128xbf16>, vector<128x128xf32> -> vector<128x128xf32>
    %7 = vector.broadcast %3 : vector<128x1xf32> to vector<128x128xf32>
    %8 = arith.mulf %6, %7 : vector<128x128xf32>
    %9 = arith.truncf %8 : vector<128x128xf32> to vector<128x128xbf16>
    %cst_7 = arith.constant dense<0.000000e+00> : vector<128x128xf32>
    %10 = tpu.matmul %2, %9, %cst_7 {dimension_numbers = #tpu.dot_dimension_numbers<[1], [0], [0], [1], [0, 0, 1, 1], [], []>} : vector<128x128xbf16>, vector<128x128xbf16>, vector<128x128xf32> -> vector<128x128xf32>
    %11 = vector.broadcast %3 : vector<128x1xf32> to vector<128x128xf32>
    %12 = arith.mulf %10, %11 : vector<128x128xf32>
    %c0_8 = arith.constant 0 : index
    %c0_9 = arith.constant 0 : index
    %13 = vector.load %arg4[%c0_8, %c0_9] : memref<1x128xf32, #tpu.memory_space<vmem>>, vector<1x128xf32>
    %14 = vector.broadcast %13 : vector<1x128xf32> to vector<128x128xf32>
    %15 = arith.addf %12, %14 : vector<128x128xf32>
    %cst_10 = arith.constant 0.000000e+00 : f32
    %16 = vector.broadcast %cst_10 : f32 to vector<128x128xf32>
    %17 = arith.maximumf %15, %16 : vector<128x128xf32>
    %18 = arith.truncf %17 : vector<128x128xf32> to vector<128x128xbf16>
    %c0_11 = arith.constant 0 : index
    %c0_12 = arith.constant 0 : index
    %19 = vector.load %arg5[%c0_11, %c0_12] : memref<128x128xbf16, #tpu.memory_space<vmem>>, vector<128x128xbf16>
    %cst_13 = arith.constant dense<0.000000e+00> : vector<128x128xf32>
    %20 = tpu.matmul %18, %19, %cst_13 {dimension_numbers = #tpu.dot_dimension_numbers<[1], [0], [0], [1], [0, 0, 1, 1], [], []>} : vector<128x128xbf16>, vector<128x128xbf16>, vector<128x128xf32> -> vector<128x128xf32>
    %21 = vector.broadcast %3 : vector<128x1xf32> to vector<128x128xf32>
    %22 = arith.mulf %20, %21 : vector<128x128xf32>
    %23 = arith.truncf %22 : vector<128x128xf32> to vector<128x128xbf16>
    %cst_14 = arith.constant dense<0.000000e+00> : vector<128x128xf32>
    %24 = tpu.matmul %2, %23, %cst_14 {dimension_numbers = #tpu.dot_dimension_numbers<[1], [0], [0], [1], [0, 0, 1, 1], [], []>} : vector<128x128xbf16>, vector<128x128xbf16>, vector<128x128xf32> -> vector<128x128xf32>
    %25 = vector.broadcast %3 : vector<128x1xf32> to vector<128x128xf32>
    %26 = arith.mulf %24, %25 : vector<128x128xf32>
    %c0_15 = arith.constant 0 : index
    %c0_16 = arith.constant 0 : index
    %27 = vector.load %arg6[%c0_15, %c0_16] : memref<1x128xf32, #tpu.memory_space<vmem>>, vector<1x128xf32>
    %28 = vector.broadcast %27 : vector<1x128xf32> to vector<128x128xf32>
    %29 = arith.addf %26, %28 : vector<128x128xf32>
    %c0_17 = arith.constant 0 : index
    %c0_18 = arith.constant 0 : index
    %30 = vector.load %arg7[%c0_17, %c0_18] : memref<1x128xf32, #tpu.memory_space<vmem>>, vector<1x128xf32>
    %31 = vector.broadcast %30 : vector<1x128xf32> to vector<128x128xf32>
    %32 = arith.addf %29, %31 : vector<128x128xf32>
    %cst_19 = arith.constant dense<0xFF800000> : vector<128xf32>
    %33 = vector.multi_reduction <maximumf>, %32, %cst_19 [1] : vector<128x128xf32> to vector<128xf32>
    %34 = vector.shape_cast %33 : vector<128xf32> to vector<128x1xf32>
    %35 = vector.broadcast %34 : vector<128x1xf32> to vector<128x128xf32>
    %36 = arith.subf %32, %35 : vector<128x128xf32>
    %37 = math.exp %36 : vector<128x128xf32>
    %cst_20 = arith.constant dense<0.000000e+00> : vector<128xf32>
    %38 = vector.multi_reduction <add>, %37, %cst_20 [1] : vector<128x128xf32> to vector<128xf32>
    %39 = vector.shape_cast %38 : vector<128xf32> to vector<128x1xf32>
    %40 = math.log %39 : vector<128x1xf32>
    %41 = vector.broadcast %40 : vector<128x1xf32> to vector<128x128xf32>
    %42 = arith.subf %36, %41 : vector<128x128xf32>
    %c0_21 = arith.constant 0 : index
    %c0_22 = arith.constant 0 : index
    %43 = vector.load %arg8[%c0_21, %c0_22] : memref<128x128xf32, #tpu.memory_space<vmem>>, vector<128x128xf32>
    tpu.vector_store %arg8[%c0_21, %c0_22], %42 {strides = array<i32>} : memref<128x128xf32, #tpu.memory_space<vmem>>, vector<128x128xf32>,
    return
  }
}

</mosaic_0001>

<llo_original>
// kernel: tpu_custom_call.1
$region0: #{tpu_custom_call.1}
  #allocation0 [shape = 'u32[]', space=smem, size = 0x4, offset = 0x4, fixed_abs, tag = 'smem constant byte address 0x4 - core index']
  #allocation1 [shape = 'u32[144,128]{1,0:T(1,128)}', space=vmem, size = 0x12000, scoped, tag = 'internal scratch']
  %s0 = inlined_call_operand.hbm [shape: s8[128,128], index: 0, kind: input, shape index: {}]
  %s1 = inlined_call_operand.vmem [shape: f32[128,1], index: 1, kind: input, shape index: {}]
  %s2 = inlined_call_operand.vmem [shape: bf16[128,128], index: 2, kind: input, shape index: {}]
  %s3 = inlined_call_operand.vmem [shape: bf16[128,128], index: 3, kind: input, shape index: {}]
  %s4 = inlined_call_operand.vmem [shape: f32[1,128], index: 4, kind: input, shape index: {}]
  %s5 = inlined_call_operand.hbm [shape: bf16[128,128], index: 5, kind: input, shape index: {}]
  %s6 = inlined_call_operand.vmem [shape: f32[1,128], index: 6, kind: input, shape index: {}]
  %s7 = inlined_call_operand.vmem [shape: f32[1,128], index: 7, kind: input, shape index: {}]
  %s8 = inlined_call_operand.hbm [shape: f32[128,128], index: 8, kind: output, shape index: {}]
  %s9 = sld [smem:[#allocation0]]
  $region50: #{tpu_custom_call.1} parent=0
    _
  %s11 = ssub.s32 1, %s9
  %s12 = scalar_select 0, %s11, %s9
  $region1: #{tpu_custom_call.1} parent=0
    #allocation2 [shape = 'u8[16384]{0}', space=vmem, size = 0x4000, scoped, tag = 'input window, operand 0, single buffered']
    #allocation3 [shape = 's32[1]{0}', space=sflag, size = 0x4, scoped, tag = 'scoped memory for tpu_custom_call.1']
    #allocation4 [shape = 's32[1]{0}', space=sflag, size = 0x4, scoped, tag = 'scoped memory for tpu_custom_call.1']
    #allocation5 [shape = 'u8[32768]{0}', space=vmem, size = 0x8000, scoped, tag = 'input window, operand 5, single buffered']
    #allocation6 [shape = 's32[1]{0}', space=sflag, size = 0x4, scoped, tag = 'scoped memory for tpu_custom_call.1']
    #allocation7 [shape = 'u8[65536]{0}', space=vmem, size = 0x10000, scoped, tag = 'output window, operand 0, single buffered']
    %13 = vsyncpa [#allocation3], 0
    %14 = vsyncpa [#allocation6], 0
    %15 = vsyncpa [#allocation4], 0
    // Predicated region
    $region2: #{tpu_custom_call.1} parent=1 // pred_check
      _
    $region3: #{tpu_custom_call.1} parent=1 // pred_check_branch
      %17 = sbr.rel (0) target = $region5
    $region4: #{tpu_custom_call.1} parent=1 // pred_region
      %s19 = ssub.s32 512, 512
      %20 = vsyncadd [#allocation3], %s19
      %s21 = sshll.u32 [#allocation2], 4
      %s22 = int_to_ptr.vmem [resolvable:$true] %s21
      %27 = dma.hbm_to_vmem [thread:$0]  %s0, 512, %s22, [#allocation3], 128, 128, 8
    $region5: #{tpu_custom_call.1} parent=1 // pred_fallthru
      _
    // Predicated region
    $region6: #{tpu_custom_call.1} parent=1 // pred_check
      _
    $region7: #{tpu_custom_call.1} parent=1 // pred_check_branch
      %29 = sbr.rel (0) target = $region9
    $region8: #{tpu_custom_call.1} parent=1 // pred_region
      _
    $region9: #{tpu_custom_call.1} parent=1 // pred_fallthru
      _
    // Predicated region
    $region10: #{tpu_custom_call.1} parent=1 // pred_check
      _
    $region11: #{tpu_custom_call.1} parent=1 // pred_check_branch
      %31 = sbr.rel (0) target = $region13
    $region12: #{tpu_custom_call.1} parent=1 // pred_region
      _
    $region13: #{tpu_custom_call.1} parent=1 // pred_fallthru
      _
    // Predicated region
    $region14: #{tpu_custom_call.1} parent=1 // pred_check
      _
    $region15: #{tpu_custom_call.1} parent=1 // pred_check_branch
      %33 = sbr.rel (0) target = $region17
    $region16: #{tpu_custom_call.1} parent=1 // pred_region
      _
    $region17: #{tpu_custom_call.1} parent=1 // pred_fallthru
      _
    // Predicated region
    $region18: #{tpu_custom_call.1} parent=1 // pred_check
      _
    $region19: #{tpu_custom_call.1} parent=1 // pred_check_branch
      %35 = sbr.rel (0) target = $region21
    $region20: #{tpu_custom_call.1} parent=1 // pred_region
      _
    $region21: #{tpu_custom_call.1} parent=1 // pred_fallthru
      _
    // Predicated region
    $region22: #{tpu_custom_call.1} parent=1 // pred_check
      _
    $region23: #{tpu_custom_call.1} parent=1 // pred_check_branch
      %37 = sbr.rel (0) target = $region25
    $region24: #{tpu_custom_call.1} parent=1 // pred_region
      %s39 = ssub.s32 1024, 1024
      %40 = vsyncadd [#allocation6], %s39
      %s41 = sshll.u32 [#allocation5], 4
      %s42 = int_to_ptr.vmem [resolvable:$true] %s41
      %47 = dma.hbm_to_vmem [thread:$0]  %s5, 1024, %s42, [#allocation6], 64, 64, 4
    $region25: #{tpu_custom_call.1} parent=1 // pred_fallthru
      _
    // Predicated region
    $region26: #{tpu_custom_call.1} parent=1 // pred_check
      _
    $region27: #{tpu_custom_call.1} parent=1 // pred_check_branch
      %49 = sbr.rel (0) target = $region29
    $region28: #{tpu_custom_call.1} parent=1 // pred_region
      _
    $region29: #{tpu_custom_call.1} parent=1 // pred_fallthru
      _
    // Predicated region
    $region30: #{tpu_custom_call.1} parent=1 // pred_check
      _
    $region31: #{tpu_custom_call.1} parent=1 // pred_check_branch
      %51 = sbr.rel (0) target = $region33
    $region32: #{tpu_custom_call.1} parent=1 // pred_region
      _
    $region33: #{tpu_custom_call.1} parent=1 // pred_fallthru
      _
    // Predicated region
    $region34: #{tpu_custom_call.1} parent=1 // pred_check
      _
    $region35: #{tpu_custom_call.1} parent=1 // pred_check_branch
      %53 = sbr.rel (0) target = $region37
    $region36: #{tpu_custom_call.1} parent=1 // pred_region
      %54 = dma.done [#allocation3], 512
    $region37: #{tpu_custom_call.1} parent=1 // pred_fallthru
      _
    // Predicated region
    $region38: #{tpu_custom_call.1} parent=1 // pred_check
      _
    $region39: #{tpu_custom_call.1} parent=1 // pred_check_branch
      %56 = sbr.rel (0) target = $region41
    $region40: #{tpu_custom_call.1} parent=1 // pred_region
      %57 = dma.done [#allocation6], 1024
    $region41: #{tpu_custom_call.1} parent=1 // pred_fallthru
      _
    %v59 = vld [vmem:[#allocation2] sm:$0xff]
    %v60 = vld [vmem:[#allocation2 + $0x8] sm:$0xff]
    %v61 = vld [vmem:[#allocation2 + $0x10] sm:$0xff]
    %v62 = vld [vmem:[#allocation2 + $0x18] sm:$0xff]
    %v63 = vunpack.c.l.s8.bf16 %v59
    %v64 = vunpack.c.h.s8.bf16 %v59
    %v65 = vunpack.c.l.s8.bf16 %v60
    %v66 = vunpack.c.h.s8.bf16 %v60
    %v67 = vunpack.c.l.s8.bf16 %v61
    %v68 = vunpack.c.h.s8.bf16 %v61
    %v69 = vunpack.c.l.s8.bf16 %v62
    %v70 = vunpack.c.h.s8.bf16 %v62
    %v71 = vld [vmem:[%s1] sm:$0xff]
    %v72 = vld [vmem:[%s1 + $0x8] sm:$0xff]
    %v73 = vld [vmem:[%s1 + $0x10] sm:$0xff]
    %v74 = vld [vmem:[%s1 + $0x18] sm:$0xff]
    %v75 = vld [vmem:[%s1 + $0x20] sm:$0xff]
    %v76 = vld [vmem:[%s1 + $0x28] sm:$0xff]
    %v77 = vld [vmem:[%s1 + $0x30] sm:$0xff]
    %v78 = vld [vmem:[%s1 + $0x38] sm:$0xff]
    %v79 = vld [vmem:[%s1 + $0x40] sm:$0xff]
    %v80 = vld [vmem:[%s1 + $0x48] sm:$0xff]
    %v81 = vld [vmem:[%s1 + $0x50] sm:$0xff]
    %v82 = vld [vmem:[%s1 + $0x58] sm:$0xff]
    %v83 = vld [vmem:[%s1 + $0x60] sm:$0xff]
    %v84 = vld [vmem:[%s1 + $0x68] sm:$0xff]
    %v85 = vld [vmem:[%s1 + $0x70] sm:$0xff]
    %v86 = vld [vmem:[%s1 + $0x78] sm:$0xff]
    %v87 = vld [vmem:[%s2] sm:$0xf]
    %v88 = vld [vmem:[%s2 + $0x4] sm:$0xf]
    %v89 = vld [vmem:[%s2 + $0x8] sm:$0xf]
    %v90 = vld [vmem:[%s2 + $0xc] sm:$0xf]
    %v91 = vld [vmem:[%s2 + $0x10] sm:$0xf]
    %v92 = vld [vmem:[%s2 + $0x14] sm:$0xf]
    %v93 = vld [vmem:[%s2 + $0x18] sm:$0xf]
    %v94 = vld [vmem:[%s2 + $0x1c] sm:$0xf]
    %v95 = vld [vmem:[%s2 + $0x20] sm:$0xf]
    %v96 = vld [vmem:[%s2 + $0x24] sm:$0xf]
    %v97 = vld [vmem:[%s2 + $0x28] sm:$0xf]
    %v98 = vld [vmem:[%s2 + $0x2c] sm:$0xf]
    %v99 = vld [vmem:[%s2 + $0x30] sm:$0xf]
    %v100 = vld [vmem:[%s2 + $0x34] sm:$0xf]
    %v101 = vld [vmem:[%s2 + $0x38] sm:$0xf]
    %v102 = vld [vmem:[%s2 + $0x3c] sm:$0xf]
    %v103 = vld [vmem:[%s3] sm:$0xf]
    %v104 = vld [vmem:[%s3 + $0x4] sm:$0xf]
    %v105 = vld [vmem:[%s3 + $0x8] sm:$0xf]
    %v106 = vld [vmem:[%s3 + $0xc] sm:$0xf]
    %v107 = vld [vmem:[%s3 + $0x10] sm:$0xf]
    %v108 = vld [vmem:[%s3 + $0x14] sm:$0xf]
    %v109 = vld [vmem:[%s3 + $0x18] sm:$0xf]
    %v110 = vld [vmem:[%s3 + $0x1c] sm:$0xf]
    %v111 = vld [vmem:[%s3 + $0x20] sm:$0xf]
    %v112 = vld [vmem:[%s3 + $0x24] sm:$0xf]
    %v113 = vld [vmem:[%s3 + $0x28] sm:$0xf]
    %v114 = vld [vmem:[%s3 + $0x2c] sm:$0xf]
    %v115 = vld [vmem:[%s3 + $0x30] sm:$0xf]
    %v116 = vld [vmem:[%s3 + $0x34] sm:$0xf]
    %v117 = vld [vmem:[%s3 + $0x38] sm:$0xf]
    %v118 = vld [vmem:[%s3 + $0x3c] sm:$0xf]
    %v135 = vunpack.c.l.b16 %v87
    %v136 = vunpack.c.l.b16 %v88
    %v137 = vunpack.c.l.b16 %v89
    %v138 = vunpack.c.l.b16 %v90
    %v139 = vunpack.c.l.b16 %v91
    %v140 = vunpack.c.l.b16 %v92
    %v141 = vunpack.c.l.b16 %v93
    %v142 = vunpack.c.l.b16 %v94
    %v143 = vunpack.c.l.b16 %v95
    %v144 = vunpack.c.l.b16 %v96
    %v145 = vunpack.c.l.b16 %v97
    %v146 = vunpack.c.l.b16 %v98
    %v147 = vunpack.c.l.b16 %v99
    %v148 = vunpack.c.l.b16 %v100
    %v149 = vunpack.c.l.b16 %v101
    %v150 = vunpack.c.l.b16 %v102
    %v151 = vpack.c.b16 %v136, %v135
    %v152 = vpack.c.b16 %v138, %v137
    %v153 = vpack.c.b16 %v140, %v139
    %v154 = vpack.c.b16 %v142, %v141
    %v155 = vpack.c.b16 %v144, %v143
    %v156 = vpack.c.b16 %v146, %v145
    %v157 = vpack.c.b16 %v148, %v147
    %v158 = vpack.c.b16 %v150, %v149
    %v183 = vunpack.c.l.b16 %v103
    %v184 = vunpack.c.l.b16 %v104
    %v185 = vunpack.c.l.b16 %v105
    %v186 = vunpack.c.l.b16 %v106
    %v187 = vunpack.c.l.b16 %v107
    %v188 = vunpack.c.l.b16 %v108
    %v189 = vunpack.c.l.b16 %v109
    %v190 = vunpack.c.l.b16 %v110
    %v191 = vunpack.c.l.b16 %v111
    %v192 = vunpack.c.l.b16 %v112
    %v193 = vunpack.c.l.b16 %v113
    %v194 = vunpack.c.l.b16 %v114
    %v195 = vunpack.c.l.b16 %v115
    %v196 = vunpack.c.l.b16 %v116
    %v197 = vunpack.c.l.b16 %v117
    %v198 = vunpack.c.l.b16 %v118
    %v199 = vpack.c.b16 %v184, %v183
    %v200 = vpack.c.b16 %v186, %v185
    %v201 = vpack.c.b16 %v188, %v187
    %v202 = vpack.c.b16 %v190, %v189
    %v203 = vpack.c.b16 %v192, %v191
    %v204 = vpack.c.b16 %v194, %v193
    %v205 = vpack.c.b16 %v196, %v195
    %v206 = vpack.c.b16 %v198, %v197
    %215 = vmatprep.subr.bf16.mxu0 0
    %216 = vmatpush1.bf16.msra.mxu0 %v206
    %217 = vmatprep.subr.bf16.mxu0 0
    %218 = vmatpush1.bf16.msra.mxu0 %v205
    %219 = vmatprep.subr.bf16.mxu0 0
    %220 = vmatpush1.bf16.msra.mxu0 %v204
    %221 = vmatprep.subr.bf16.mxu0 0
    %222 = vmatpush1.bf16.msra.mxu0 %v203
    %223 = vmatprep.subr.bf16.mxu0 0
    %224 = vmatpush1.bf16.msra.mxu0 %v202
    %225 = vmatprep.subr.bf16.mxu0 0
    %226 = vmatpush1.bf16.msra.mxu0 %v201
    %227 = vmatprep.subr.bf16.mxu0 0
    %228 = vmatpush1.bf16.msra.mxu0 %v200
    %229 = vmatprep.subr.bf16.mxu0 0
    %230 = vmatpush1.bf16.msra.mxu0 %v199
    %231 = vmatprep.subr.bf16.mxu0 0
    %232 = vmatpush2.bf16.msra.mxu0 0
    %233 = vmatprep.subr.bf16.mxu0 0
    %234 = vmatpush2.bf16.msra.mxu0 0
    %235 = vmatprep.subr.bf16.mxu0 0
    %236 = vmatpush2.bf16.msra.mxu0 0
    %237 = vmatprep.subr.bf16.mxu0 0
    %238 = vmatpush2.bf16.msra.mxu0 0
    %239 = vmatprep.subr.bf16.mxu0 0
    %240 = vmatpush2.bf16.msra.mxu0 0
    %241 = vmatprep.subr.bf16.mxu0 0
    %242 = vmatpush2.bf16.msra.mxu0 0
    %243 = vmatprep.subr.bf16.mxu0 0
    %244 = vmatpush2.bf16.msra.mxu0 0
    %245 = vmatprep.subr.bf16.mxu0 0
    %246 = vmatpush2.bf16.msra.mxu0 0
    %247 = vmatprep.mubr.bf16.mxu0 0
    %248 = vmatmul.mubr.bf16.gmra.mxu0 %v151
    %v249 = vpop.f32.mrf.mxu0
    %v250 = vadd.f32 0.0, %v249
    %v251 = vpop.f32.mrf.mxu0
    %v252 = vpop.f32.mrf.mxu0
    %v253 = vadd.f32 0.0, %v252
    %v254 = vpop.f32.mrf.mxu0
    %255 = vmatprep.mubr.bf16.mxu0 0
    %256 = vmatmul.mubr.bf16.gmra.mxu0 %v152
    %v257 = vpop.f32.mrf.mxu0
    %v258 = vadd.f32 0.0, %v257
    %v259 = vpop.f32.mrf.mxu0
    %v260 = vpop.f32.mrf.mxu0
    %v261 = vadd.f32 0.0, %v260
    %v262 = vpop.f32.mrf.mxu0
    %263 = vmatprep.mubr.bf16.mxu0 0
    %264 = vmatmul.mubr.bf16.gmra.mxu0 %v153
    %v265 = vpop.f32.mrf.mxu0
    %v266 = vadd.f32 0.0, %v265
    %v267 = vpop.f32.mrf.mxu0
    %v268 = vpop.f32.mrf.mxu0
    %v269 = vadd.f32 0.0, %v268
    %v270 = vpop.f32.mrf.mxu0
    %271 = vmatprep.mubr.bf16.mxu0 0
    %272 = vmatmul.mubr.bf16.gmra.mxu0 %v154
    %v273 = vpop.f32.mrf.mxu0
    %v274 = vadd.f32 0.0, %v273
    %v275 = vpop.f32.mrf.mxu0
    %v276 = vpop.f32.mrf.mxu0
    %v277 = vadd.f32 0.0, %v276
    %v278 = vpop.f32.mrf.mxu0
    %279 = vmatprep.mubr.bf16.mxu0 0
    %280 = vmatmul.mubr.bf16.gmra.mxu0 %v155
    %v281 = vpop.f32.mrf.mxu0
    %v282 = vadd.f32 0.0, %v281
    %v283 = vpop.f32.mrf.mxu0
    %v284 = vpop.f32.mrf.mxu0
    %v285 = vadd.f32 0.0, %v284
    %v286 = vpop.f32.mrf.mxu0
    %287 = vmatprep.mubr.bf16.mxu0 0
    %288 = vmatmul.mubr.bf16.gmra.mxu0 %v156
    %v289 = vpop.f32.mrf.mxu0
    %v290 = vadd.f32 0.0, %v289
    %v291 = vpop.f32.mrf.mxu0
    %v292 = vpop.f32.mrf.mxu0
    %v293 = vadd.f32 0.0, %v292
    %v294 = vpop.f32.mrf.mxu0
    %295 = vmatprep.mubr.bf16.mxu0 0
    %296 = vmatmul.mubr.bf16.gmra.mxu0 %v157
    %v297 = vpop.f32.mrf.mxu0
    %v298 = vadd.f32 0.0, %v297
    %v299 = vpop.f32.mrf.mxu0
    %v300 = vpop.f32.mrf.mxu0
    %v301 = vadd.f32 0.0, %v300
    %v302 = vpop.f32.mrf.mxu0
    %303 = vmatprep.mubr.bf16.mxu0 0
    %304 = vmatmul.mubr.bf16.gmra.mxu0 %v158
    %v305 = vpop.f32.mrf.mxu0
    %v306 = vadd.f32 0.0, %v305
    %v307 = vpop.f32.mrf.mxu0
    %v308 = vpop.f32.mrf.mxu0
    %v309 = vadd.f32 0.0, %v308
    %v310 = vpop.f32.mrf.mxu0
    %311 = vdwg.mxu0
    %313 = vset.pattern.permute.xlu0 0
    %314 = vperm.xlu0 %313, %v71
    %v315 = vpop.permute.xlu0 %314
    %318 = vset.pattern.permute.xlu0 0
    %319 = vperm.xlu0 %318, %v72
    %v320 = vpop.permute.xlu0 %319
    %323 = vset.pattern.permute.xlu0 0
    %324 = vperm.xlu0 %323, %v73
    %v325 = vpop.permute.xlu0 %324
    %328 = vset.pattern.permute.xlu0 0
    %329 = vperm.xlu0 %328, %v74
    %v330 = vpop.permute.xlu0 %329
    %333 = vset.pattern.permute.xlu0 0
    %334 = vperm.xlu0 %333, %v75
    %v335 = vpop.permute.xlu0 %334
    %338 = vset.pattern.permute.xlu0 0
    %339 = vperm.xlu0 %338, %v76
    %v340 = vpop.permute.xlu0 %339
    %343 = vset.pattern.permute.xlu0 0
    %344 = vperm.xlu0 %343, %v77
    %v345 = vpop.permute.xlu0 %344
    %348 = vset.pattern.permute.xlu0 0
    %349 = vperm.xlu0 %348, %v78
    %v350 = vpop.permute.xlu0 %349
    %353 = vset.pattern.permute.xlu0 0
    %354 = vperm.xlu0 %353, %v79
    %v355 = vpop.permute.xlu0 %354
    %358 = vset.pattern.permute.xlu0 0
    %359 = vperm.xlu0 %358, %v80
    %v360 = vpop.permute.xlu0 %359
    %363 = vset.pattern.permute.xlu0 0
    %364 = vperm.xlu0 %363, %v81
    %v365 = vpop.permute.xlu0 %364
    %368 = vset.pattern.permute.xlu0 0
    %369 = vperm.xlu0 %368, %v82
    %v370 = vpop.permute.xlu0 %369
    %373 = vset.pattern.permute.xlu0 0
    %374 = vperm.xlu0 %373, %v83
    %v375 = vpop.permute.xlu0 %374
    %378 = vset.pattern.permute.xlu0 0
    %379 = vperm.xlu0 %378, %v84
    %v380 = vpop.permute.xlu0 %379
    %383 = vset.pattern.permute.xlu0 0
    %384 = vperm.xlu0 %383, %v85
    %v385 = vpop.permute.xlu0 %384
    %388 = vset.pattern.permute.xlu0 0
    %389 = vperm.xlu0 %388, %v86
    %v390 = vpop.permute.xlu0 %389
    %v392 = vmul.f32 %v250, %v315
    %v393 = vmul.f32 %v253, %v320
    %v394 = vmul.f32 %v258, %v325
    %v395 = vmul.f32 %v261, %v330
    %v396 = vmul.f32 %v266, %v335
    %v397 = vmul.f32 %v269, %v340
    %v398 = vmul.f32 %v274, %v345
    %v399 = vmul.f32 %v277, %v350
    %v400 = vmul.f32 %v282, %v355
    %v401 = vmul.f32 %v285, %v360
    %v402 = vmul.f32 %v290, %v365
    %v403 = vmul.f32 %v293, %v370
    %v404 = vmul.f32 %v298, %v375
    %v405 = vmul.f32 %v301, %v380
    %v406 = vmul.f32 %v306, %v385
    %v407 = vmul.f32 %v309, %v390
    %v408 = vpack.c.bf16 %v393, %v392
    %v409 = vpack.c.bf16 %v395, %v394
    %v410 = vpack.c.bf16 %v397, %v396
    %v411 = vpack.c.bf16 %v399, %v398
    %v412 = vpack.c.bf16 %v401, %v400
    %v413 = vpack.c.bf16 %v403, %v402
    %v414 = vpack.c.bf16 %v405, %v404
    %v415 = vpack.c.bf16 %v407, %v406
    %416 = vmatprep.subr.bf16.mxu0 0
    %417 = vmatpush1.bf16.msra.mxu0 %v415
    %418 = vmatprep.subr.bf16.mxu0 0
    %419 = vmatpush1.bf16.msra.mxu0 %v414
    %420 = vmatprep.subr.bf16.mxu0 0
    %421 = vmatpush1.bf16.msra.mxu0 %v413
    %422 = vmatprep.subr.bf16.mxu0 0
    %423 = vmatpush1.bf16.msra.mxu0 %v412
    %424 = vmatprep.subr.bf16.mxu0 0
    %425 = vmatpush1.bf16.msra.mxu0 %v411
    %426 = vmatprep.subr.bf16.mxu0 0
    %427 = vmatpush1.bf16.msra.mxu0 %v410
    %428 = vmatprep.subr.bf16.mxu0 0
    %429 = vmatpush1.bf16.msra.mxu0 %v409
    %430 = vmatprep.subr.bf16.mxu0 0
    %431 = vmatpush1.bf16.msra.mxu0 %v408
    %432 = vmatprep.subr.bf16.mxu0 0
    %433 = vmatpush2.bf16.msra.mxu0 0
    %434 = vmatprep.subr.bf16.mxu0 0
    %435 = vmatpush2.bf16.msra.mxu0 0
    %436 = vmatprep.subr.bf16.mxu0 0
    %437 = vmatpush2.bf16.msra.mxu0 0
    %438 = vmatprep.subr.bf16.mxu0 0
    %439 = vmatpush2.bf16.msra.mxu0 0
    %440 = vmatprep.subr.bf16.mxu0 0
    %441 = vmatpush2.bf16.msra.mxu0 0
    %442 = vmatprep.subr.bf16.mxu0 0
    %443 = vmatpush2.bf16.msra.mxu0 0
    %444 = vmatprep.subr.bf16.mxu0 0
    %445 = vmatpush2.bf16.msra.mxu0 0
    %446 = vmatprep.subr.bf16.mxu0 0
    %447 = vmatpush2.bf16.msra.mxu0 0
    %448 = vmatprep.mubr.bf16.mxu0 0
    %449 = vmatmul.mubr.bf16.gmra.mxu0 %v63
    %v450 = vpop.f32.mrf.mxu0
    %v451 = vadd.f32 0.0, %v450
    %v452 = vpop.f32.mrf.mxu0
    %v453 = vpop.f32.mrf.mxu0
    %v454 = vadd.f32 0.0, %v453
    %v455 = vpop.f32.mrf.mxu0
    %456 = vmatprep.mubr.bf16.mxu0 0
    %457 = vmatmul.mubr.bf16.gmra.mxu0 %v64
    %v458 = vpop.f32.mrf.mxu0
    %v459 = vadd.f32 0.0, %v458
    %v460 = vpop.f32.mrf.mxu0
    %v461 = vpop.f32.mrf.mxu0
    %v462 = vadd.f32 0.0, %v461
    %v463 = vpop.f32.mrf.mxu0
    %464 = vmatprep.mubr.bf16.mxu0 0
    %465 = vmatmul.mubr.bf16.gmra.mxu0 %v65
    %v466 = vpop.f32.mrf.mxu0
    %v467 = vadd.f32 0.0, %v466
    %v468 = vpop.f32.mrf.mxu0
    %v469 = vpop.f32.mrf.mxu0
    %v470 = vadd.f32 0.0, %v469
    %v471 = vpop.f32.mrf.mxu0
    %472 = vmatprep.mubr.bf16.mxu0 0
    %473 = vmatmul.mubr.bf16.gmra.mxu0 %v66
    %v474 = vpop.f32.mrf.mxu0
    %v475 = vadd.f32 0.0, %v474
    %v476 = vpop.f32.mrf.mxu0
    %v477 = vpop.f32.mrf.mxu0
    %v478 = vadd.f32 0.0, %v477
    %v479 = vpop.f32.mrf.mxu0
    %480 = vmatprep.mubr.bf16.mxu0 0
    %481 = vmatmul.mubr.bf16.gmra.mxu0 %v67
    %v482 = vpop.f32.mrf.mxu0
    %v483 = vadd.f32 0.0, %v482
    %v484 = vpop.f32.mrf.mxu0
    %v485 = vpop.f32.mrf.mxu0
    %v486 = vadd.f32 0.0, %v485
    %v487 = vpop.f32.mrf.mxu0
    %488 = vmatprep.mubr.bf16.mxu0 0
    %489 = vmatmul.mubr.bf16.gmra.mxu0 %v68
    %v490 = vpop.f32.mrf.mxu0
    %v491 = vadd.f32 0.0, %v490
    %v492 = vpop.f32.mrf.mxu0
    %v493 = vpop.f32.mrf.mxu0
    %v494 = vadd.f32 0.0, %v493
    %v495 = vpop.f32.mrf.mxu0
    %496 = vmatprep.mubr.bf16.mxu0 0
    %497 = vmatmul.mubr.bf16.gmra.mxu0 %v69
    %v498 = vpop.f32.mrf.mxu0
    %v499 = vadd.f32 0.0, %v498
    %v500 = vpop.f32.mrf.mxu0
    %v501 = vpop.f32.mrf.mxu0
    %v502 = vadd.f32 0.0, %v501
    %v503 = vpop.f32.mrf.mxu0
    %504 = vmatprep.mubr.bf16.mxu0 0
    %505 = vmatmul.mubr.bf16.gmra.mxu0 %v70
    %v506 = vpop.f32.mrf.mxu0
    %v507 = vadd.f32 0.0, %v506
    %v508 = vpop.f32.mrf.mxu0
    %v509 = vpop.f32.mrf.mxu0
    %v510 = vadd.f32 0.0, %v509
    %v511 = vpop.f32.mrf.mxu0
    %512 = vdwg.mxu0
    %v513 = vmul.f32 %v451, %v315
    %v514 = vmul.f32 %v454, %v320
    %v515 = vmul.f32 %v459, %v325
    %v516 = vmul.f32 %v462, %v330
    %v517 = vmul.f32 %v467, %v335
    %v518 = vmul.f32 %v470, %v340
    %v519 = vmul.f32 %v475, %v345
    %v520 = vmul.f32 %v478, %v350
    %v521 = vmul.f32 %v483, %v355
    %v522 = vmul.f32 %v486, %v360
    %v523 = vmul.f32 %v491, %v365
    %v524 = vmul.f32 %v494, %v370
    %v525 = vmul.f32 %v499, %v375
    %v526 = vmul.f32 %v502, %v380
    %v527 = vmul.f32 %v507, %v385
    %v528 = vmul.f32 %v510, %v390
    %v529 = vld [vmem:[%s4] sm:$0x1]
    %v531 = vlaneseq
    %v532 = vshrl.u32 %v531, 7
    %v533 = vsub.s32 0, %v532
    %v534 = vrot.slane %v529, %v533
    %v536 = vadd.f32 %v513, %v534
    %v537 = vadd.f32 %v514, %v534
    %v538 = vadd.f32 %v515, %v534
    %v539 = vadd.f32 %v516, %v534
    %v540 = vadd.f32 %v517, %v534
    %v541 = vadd.f32 %v518, %v534
    %v542 = vadd.f32 %v519, %v534
    %v543 = vadd.f32 %v520, %v534
    %v544 = vadd.f32 %v521, %v534
    %v545 = vadd.f32 %v522, %v534
    %v546 = vadd.f32 %v523, %v534
    %v547 = vadd.f32 %v524, %v534
    %v548 = vadd.f32 %v525, %v534
    %v549 = vadd.f32 %v526, %v534
    %v550 = vadd.f32 %v527, %v534
    %v551 = vadd.f32 %v528, %v534
    %v552 = vmax.f32 %v536, 0.0
    %v553 = vmax.f32 %v537, 0.0
    %v554 = vmax.f32 %v538, 0.0
    %v555 = vmax.f32 %v539, 0.0
    %v556 = vmax.f32 %v540, 0.0
    %v557 = vmax.f32 %v541, 0.0
    %v558 = vmax.f32 %v542, 0.0
    %v559 = vmax.f32 %v543, 0.0
    %v560 = vmax.f32 %v544, 0.0
    %v561 = vmax.f32 %v545, 0.0
    %v562 = vmax.f32 %v546, 0.0
    %v563 = vmax.f32 %v547, 0.0
    %v564 = vmax.f32 %v548, 0.0
    %v565 = vmax.f32 %v549, 0.0
    %v566 = vmax.f32 %v550, 0.0
    %v567 = vmax.f32 %v551, 0.0
    %v568 = vpack.c.bf16 %v553, %v552
    %v569 = vpack.c.bf16 %v555, %v554
    %v570 = vpack.c.bf16 %v557, %v556
    %v571 = vpack.c.bf16 %v559, %v558
    %v572 = vpack.c.bf16 %v561, %v560
    %v573 = vpack.c.bf16 %v563, %v562
    %v574 = vpack.c.bf16 %v565, %v564
    %v575 = vpack.c.bf16 %v567, %v566
    %v576 = vld [vmem:[#allocation5] sm:$0xf]
    %v577 = vld [vmem:[#allocation5 + $0x4] sm:$0xf]
    %v578 = vld [vmem:[#allocation5 + $0x8] sm:$0xf]
    %v579 = vld [vmem:[#allocation5 + $0xc] sm:$0xf]
    %v580 = vld [vmem:[#allocation5 + $0x10] sm:$0xf]
    %v581 = vld [vmem:[#allocation5 + $0x14] sm:$0xf]
    %v582 = vld [vmem:[#allocation5 + $0x18] sm:$0xf]
    %v583 = vld [vmem:[#allocation5 + $0x1c] sm:$0xf]
    %v584 = vld [vmem:[#allocation5 + $0x20] sm:$0xf]
    %v585 = vld [vmem:[#allocation5 + $0x24] sm:$0xf]
    %v586 = vld [vmem:[#allocation5 + $0x28] sm:$0xf]
    %v587 = vld [vmem:[#allocation5 + $0x2c] sm:$0xf]
    %v588 = vld [vmem:[#allocation5 + $0x30] sm:$0xf]
    %v589 = vld [vmem:[#allocation5 + $0x34] sm:$0xf]
    %v590 = vld [vmem:[#allocation5 + $0x38] sm:$0xf]
    %v591 = vld [vmem:[#allocation5 + $0x3c] sm:$0xf]
    %v608 = vunpack.c.l.b16 %v576
    %v609 = vunpack.c.l.b16 %v577
    %v610 = vunpack.c.l.b16 %v578
    %v611 = vunpack.c.l.b16 %v579
    %v612 = vunpack.c.l.b16 %v580
    %v613 = vunpack.c.l.b16 %v581
    %v614 = vunpack.c.l.b16 %v582
    %v615 = vunpack.c.l.b16 %v583
    %v616 = vunpack.c.l.b16 %v584
    %v617 = vunpack.c.l.b16 %v585
    %v618 = vunpack.c.l.b16 %v586
    %v619 = vunpack.c.l.b16 %v587
    %v620 = vunpack.c.l.b16 %v588
    %v621 = vunpack.c.l.b16 %v589
    %v622 = vunpack.c.l.b16 %v590
    %v623 = vunpack.c.l.b16 %v591
    %v624 = vpack.c.b16 %v609, %v608
    %v625 = vpack.c.b16 %v611, %v610
    %v626 = vpack.c.b16 %v613, %v612
    %v627 = vpack.c.b16 %v615, %v614
    %v628 = vpack.c.b16 %v617, %v616
    %v629 = vpack.c.b16 %v619, %v618
    %v630 = vpack.c.b16 %v621, %v620
    %v631 = vpack.c.b16 %v623, %v622
    %640 = vmatprep.subr.bf16.mxu0 0
    %641 = vmatpush1.bf16.msra.mxu0 %v631
    %642 = vmatprep.subr.bf16.mxu0 0
    %643 = vmatpush1.bf16.msra.mxu0 %v630
    %644 = vmatprep.subr.bf16.mxu0 0
    %645 = vmatpush1.bf16.msra.mxu0 %v629
    %646 = vmatprep.subr.bf16.mxu0 0
    %647 = vmatpush1.bf16.msra.mxu0 %v628
    %648 = vmatprep.subr.bf16.mxu0 0
    %649 = vmatpush1.bf16.msra.mxu0 %v627
    %650 = vmatprep.subr.bf16.mxu0 0
    %651 = vmatpush1.bf16.msra.mxu0 %v626
    %652 = vmatprep.subr.bf16.mxu0 0
    %653 = vmatpush1.bf16.msra.mxu0 %v625
    %654 = vmatprep.subr.bf16.mxu0 0
    %655 = vmatpush1.bf16.msra.mxu0 %v624
    %656 = vmatprep.subr.bf16.mxu0 0
    %657 = vmatpush2.bf16.msra.mxu0 0
    %658 = vmatprep.subr.bf16.mxu0 0
    %659 = vmatpush2.bf16.msra.mxu0 0
    %660 = vmatprep.subr.bf16.mxu0 0
    %661 = vmatpush2.bf16.msra.mxu0 0
    %662 = vmatprep.subr.bf16.mxu0 0
    %663 = vmatpush2.bf16.msra.mxu0 0
    %664 = vmatprep.subr.bf16.mxu0 0
    %665 = vmatpush2.bf16.msra.mxu0 0
    %666 = vmatprep.subr.bf16.mxu0 0
    %667 = vmatpush2.bf16.msra.mxu0 0
    %668 = vmatprep.subr.bf16.mxu0 0
    %669 = vmatpush2.bf16.msra.mxu0 0
    %670 = vmatprep.subr.bf16.mxu0 0
    %671 = vmatpush2.bf16.msra.mxu0 0
    %672 = vmatprep.mubr.bf16.mxu0 0
    %673 = vmatmul.mubr.bf16.gmra.mxu0 %v568
    %v674 = vpop.f32.mrf.mxu0
    %v675 = vadd.f32 0.0, %v674
    %v676 = vpop.f32.mrf.mxu0
    %v677 = vpop.f32.mrf.mxu0
    %v678 = vadd.f32 0.0, %v677
    %v679 = vpop.f32.mrf.mxu0
    %680 = vmatprep.mubr.bf16.mxu0 0
    %681 = vmatmul.mubr.bf16.gmra.mxu0 %v569
    %v682 = vpop.f32.mrf.mxu0
    %v683 = vadd.f32 0.0, %v682
    %v684 = vpop.f32.mrf.mxu0
    %v685 = vpop.f32.mrf.mxu0
    %v686 = vadd.f32 0.0, %v685
    %v687 = vpop.f32.mrf.mxu0
    %688 = vmatprep.mubr.bf16.mxu0 0
    %689 = vmatmul.mubr.bf16.gmra.mxu0 %v570
    %v690 = vpop.f32.mrf.mxu0
    %v691 = vadd.f32 0.0, %v690
    %v692 = vpop.f32.mrf.mxu0
    %v693 = vpop.f32.mrf.mxu0
    %v694 = vadd.f32 0.0, %v693
    %v695 = vpop.f32.mrf.mxu0
    %696 = vmatprep.mubr.bf16.mxu0 0
    %697 = vmatmul.mubr.bf16.gmra.mxu0 %v571
    %v698 = vpop.f32.mrf.mxu0
    %v699 = vadd.f32 0.0, %v698
    %v700 = vpop.f32.mrf.mxu0
    %v701 = vpop.f32.mrf.mxu0
    %v702 = vadd.f32 0.0, %v701
    %v703 = vpop.f32.mrf.mxu0
    %704 = vmatprep.mubr.bf16.mxu0 0
    %705 = vmatmul.mubr.bf16.gmra.mxu0 %v572
    %v706 = vpop.f32.mrf.mxu0
    %v707 = vadd.f32 0.0, %v706
    %v708 = vpop.f32.mrf.mxu0
    %v709 = vpop.f32.mrf.mxu0
    %v710 = vadd.f32 0.0, %v709
    %v711 = vpop.f32.mrf.mxu0
    %712 = vmatprep.mubr.bf16.mxu0 0
    %713 = vmatmul.mubr.bf16.gmra.mxu0 %v573
    %v714 = vpop.f32.mrf.mxu0
    %v715 = vadd.f32 0.0, %v714
    %v716 = vpop.f32.mrf.mxu0
    %v717 = vpop.f32.mrf.mxu0
    %v718 = vadd.f32 0.0, %v717
    %v719 = vpop.f32.mrf.mxu0
    %720 = vmatprep.mubr.bf16.mxu0 0
    %721 = vmatmul.mubr.bf16.gmra.mxu0 %v574
    %v722 = vpop.f32.mrf.mxu0
    %v723 = vadd.f32 0.0, %v722
    %v724 = vpop.f32.mrf.mxu0
    %v725 = vpop.f32.mrf.mxu0
    %v726 = vadd.f32 0.0, %v725
    %v727 = vpop.f32.mrf.mxu0
    %728 = vmatprep.mubr.bf16.mxu0 0
    %729 = vmatmul.mubr.bf16.gmra.mxu0 %v575
    %v730 = vpop.f32.mrf.mxu0
    %v731 = vadd.f32 0.0, %v730
    %v732 = vpop.f32.mrf.mxu0
    %v733 = vpop.f32.mrf.mxu0
    %v734 = vadd.f32 0.0, %v733
    %v735 = vpop.f32.mrf.mxu0
    %736 = vdwg.mxu0
    %v737 = vmul.f32 %v675, %v315
    %v738 = vmul.f32 %v678, %v320
    %v739 = vmul.f32 %v683, %v325
    %v740 = vmul.f32 %v686, %v330
    %v741 = vmul.f32 %v691, %v335
    %v742 = vmul.f32 %v694, %v340
    %v743 = vmul.f32 %v699, %v345
    %v744 = vmul.f32 %v702, %v350
    %v745 = vmul.f32 %v707, %v355
    %v746 = vmul.f32 %v710, %v360
    %v747 = vmul.f32 %v715, %v365
    %v748 = vmul.f32 %v718, %v370
    %v749 = vmul.f32 %v723, %v375
    %v750 = vmul.f32 %v726, %v380
    %v751 = vmul.f32 %v731, %v385
    %v752 = vmul.f32 %v734, %v390
    %v753 = vpack.c.bf16 %v738, %v737
    %v754 = vpack.c.bf16 %v740, %v739
    %v755 = vpack.c.bf16 %v742, %v741
    %v756 = vpack.c.bf16 %v744, %v743
    %v757 = vpack.c.bf16 %v746, %v745
    %v758 = vpack.c.bf16 %v748, %v747
    %v759 = vpack.c.bf16 %v750, %v749
    %v760 = vpack.c.bf16 %v752, %v751
    %761 = vmatprep.subr.bf16.mxu0 0
    %762 = vmatpush1.bf16.msra.mxu0 %v760
    %763 = vmatprep.subr.bf16.mxu0 0
    %764 = vmatpush1.bf16.msra.mxu0 %v759
    %765 = vmatprep.subr.bf16.mxu0 0
    %766 = vmatpush1.bf16.msra.mxu0 %v758
    %767 = vmatprep.subr.bf16.mxu0 0
    %768 = vmatpush1.bf16.msra.mxu0 %v757
    %769 = vmatprep.subr.bf16.mxu0 0
    %770 = vmatpush1.bf16.msra.mxu0 %v756
    %771 = vmatprep.subr.bf16.mxu0 0
    %772 = vmatpush1.bf16.msra.mxu0 %v755
    %773 = vmatprep.subr.bf16.mxu0 0
    %774 = vmatpush1.bf16.msra.mxu0 %v754
    %775 = vmatprep.subr.bf16.mxu0 0
    %776 = vmatpush1.bf16.msra.mxu0 %v753
    %777 = vmatprep.subr.bf16.mxu0 0
    %778 = vmatpush2.bf16.msra.mxu0 0
    %779 = vmatprep.subr.bf16.mxu0 0
    %780 = vmatpush2.bf16.msra.mxu0 0
    %781 = vmatprep.subr.bf16.mxu0 0
    %782 = vmatpush2.bf16.msra.mxu0 0
    %783 = vmatprep.subr.bf16.mxu0 0
    %784 = vmatpush2.bf16.msra.mxu0 0
    %785 = vmatprep.subr.bf16.mxu0 0
    %786 = vmatpush2.bf16.msra.mxu0 0
    %787 = vmatprep.subr.bf16.mxu0 0
    %788 = vmatpush2.bf16.msra.mxu0 0
    %789 = vmatprep.subr.bf16.mxu0 0
    %790 = vmatpush2.bf16.msra.mxu0 0
    %791 = vmatprep.subr.bf16.mxu0 0
    %792 = vmatpush2.bf16.msra.mxu0 0
    %793 = vmatprep.mubr.bf16.mxu0 0
    %794 = vmatmul.mubr.bf16.gmra.mxu0 %v63
    %v795 = vpop.f32.mrf.mxu0
    %v796 = vadd.f32 0.0, %v795
    %v797 = vpop.f32.mrf.mxu0
    %v798 = vpop.f32.mrf.mxu0
    %v799 = vadd.f32 0.0, %v798
    %v800 = vpop.f32.mrf.mxu0
    %801 = vmatprep.mubr.bf16.mxu0 0
    %802 = vmatmul.mubr.bf16.gmra.mxu0 %v64
    %v803 = vpop.f32.mrf.mxu0
    %v804 = vadd.f32 0.0, %v803
    %v805 = vpop.f32.mrf.mxu0
    %v806 = vpop.f32.mrf.mxu0
    %v807 = vadd.f32 0.0, %v806
    %v808 = vpop.f32.mrf.mxu0
    %809 = vmatprep.mubr.bf16.mxu0 0
    %810 = vmatmul.mubr.bf16.gmra.mxu0 %v65
    %v811 = vpop.f32.mrf.mxu0
    %v812 = vadd.f32 0.0, %v811
    %v813 = vpop.f32.mrf.mxu0
    %v814 = vpop.f32.mrf.mxu0
    %v815 = vadd.f32 0.0, %v814
    %v816 = vpop.f32.mrf.mxu0
    %817 = vmatprep.mubr.bf16.mxu0 0
    %818 = vmatmul.mubr.bf16.gmra.mxu0 %v66
    %v819 = vpop.f32.mrf.mxu0
    %v820 = vadd.f32 0.0, %v819
    %v821 = vpop.f32.mrf.mxu0
    %v822 = vpop.f32.mrf.mxu0
    %v823 = vadd.f32 0.0, %v822
    %v824 = vpop.f32.mrf.mxu0
    %825 = vmatprep.mubr.bf16.mxu0 0
    %826 = vmatmul.mubr.bf16.gmra.mxu0 %v67
    %v827 = vpop.f32.mrf.mxu0
    %v828 = vadd.f32 0.0, %v827
    %v829 = vpop.f32.mrf.mxu0
    %v830 = vpop.f32.mrf.mxu0
    %v831 = vadd.f32 0.0, %v830
    %v832 = vpop.f32.mrf.mxu0
    %833 = vmatprep.mubr.bf16.mxu0 0
    %834 = vmatmul.mubr.bf16.gmra.mxu0 %v68
    %v835 = vpop.f32.mrf.mxu0
    %v836 = vadd.f32 0.0, %v835
    %v837 = vpop.f32.mrf.mxu0
    %v838 = vpop.f32.mrf.mxu0
    %v839 = vadd.f32 0.0, %v838
    %v840 = vpop.f32.mrf.mxu0
    %841 = vmatprep.mubr.bf16.mxu0 0
    %842 = vmatmul.mubr.bf16.gmra.mxu0 %v69
    %v843 = vpop.f32.mrf.mxu0
    %v844 = vadd.f32 0.0, %v843
    %v845 = vpop.f32.mrf.mxu0
    %v846 = vpop.f32.mrf.mxu0
    %v847 = vadd.f32 0.0, %v846
    %v848 = vpop.f32.mrf.mxu0
    %849 = vmatprep.mubr.bf16.mxu0 0
    %850 = vmatmul.mubr.bf16.gmra.mxu0 %v70
    %v851 = vpop.f32.mrf.mxu0
    %v852 = vadd.f32 0.0, %v851
    %v853 = vpop.f32.mrf.mxu0
    %v854 = vpop.f32.mrf.mxu0
    %v855 = vadd.f32 0.0, %v854
    %v856 = vpop.f32.mrf.mxu0
    %857 = vdwg.mxu0
    %v858 = vmul.f32 %v796, %v315
    %v859 = vmul.f32 %v799, %v320
    %v860 = vmul.f32 %v804, %v325
    %v861 = vmul.f32 %v807, %v330
    %v862 = vmul.f32 %v812, %v335
    %v863 = vmul.f32 %v815, %v340
    %v864 = vmul.f32 %v820, %v345
    %v865 = vmul.f32 %v823, %v350
    %v866 = vmul.f32 %v828, %v355
    %v867 = vmul.f32 %v831, %v360
    %v868 = vmul.f32 %v836, %v365
    %v869 = vmul.f32 %v839, %v370
    %v870 = vmul.f32 %v844, %v375
    %v871 = vmul.f32 %v847, %v380
    %v872 = vmul.f32 %v852, %v385
    %v873 = vmul.f32 %v855, %v390
    %v874 = vld [vmem:[%s6] sm:$0x1]
    %v876 = vlaneseq
    %v877 = vshrl.u32 %v876, 7
    %v878 = vsub.s32 0, %v877
    %v879 = vrot.slane %v874, %v878
    %v881 = vadd.f32 %v858, %v879
    %v882 = vadd.f32 %v859, %v879
    %v883 = vadd.f32 %v860, %v879
    %v884 = vadd.f32 %v861, %v879
    %v885 = vadd.f32 %v862, %v879
    %v886 = vadd.f32 %v863, %v879
    %v887 = vadd.f32 %v864, %v879
    %v888 = vadd.f32 %v865, %v879
    %v889 = vadd.f32 %v866, %v879
    %v890 = vadd.f32 %v867, %v879
    %v891 = vadd.f32 %v868, %v879
    %v892 = vadd.f32 %v869, %v879
    %v893 = vadd.f32 %v870, %v879
    %v894 = vadd.f32 %v871, %v879
    %v895 = vadd.f32 %v872, %v879
    %v896 = vadd.f32 %v873, %v879
    %v897 = vld [vmem:[%s7] sm:$0x1]
    %v899 = vlaneseq
    %v900 = vshrl.u32 %v899, 7
    %v901 = vsub.s32 0, %v900
    %v902 = vrot.slane %v897, %v901
    %v904 = vadd.f32 %v881, %v902
    %v905 = vadd.f32 %v882, %v902
    %v906 = vadd.f32 %v883, %v902
    %v907 = vadd.f32 %v884, %v902
    %v908 = vadd.f32 %v885, %v902
    %v909 = vadd.f32 %v886, %v902
    %v910 = vadd.f32 %v887, %v902
    %v911 = vadd.f32 %v888, %v902
    %v912 = vadd.f32 %v889, %v902
    %v913 = vadd.f32 %v890, %v902
    %v914 = vadd.f32 %v891, %v902
    %v915 = vadd.f32 %v892, %v902
    %v916 = vadd.f32 %v893, %v902
    %v917 = vadd.f32 %v894, %v902
    %v918 = vadd.f32 %v895, %v902
    %v919 = vadd.f32 %v896, %v902
    %920 = vmax.xlane.f32.xlu0 %v904
    %v921 = vpop.xlane.xlu0 %920
    %922 = vmax.xlane.f32.xlu0 %v905
    %v923 = vpop.xlane.xlu0 %922
    %924 = vmax.xlane.f32.xlu0 %v906
    %v925 = vpop.xlane.xlu0 %924
    %926 = vmax.xlane.f32.xlu0 %v907
    %v927 = vpop.xlane.xlu0 %926
    %928 = vmax.xlane.f32.xlu0 %v908
    %v929 = vpop.xlane.xlu0 %928
    %930 = vmax.xlane.f32.xlu0 %v909
    %v931 = vpop.xlane.xlu0 %930
    %932 = vmax.xlane.f32.xlu0 %v910
    %v933 = vpop.xlane.xlu0 %932
    %934 = vmax.xlane.f32.xlu0 %v911
    %v935 = vpop.xlane.xlu0 %934
    %936 = vmax.xlane.f32.xlu0 %v912
    %v937 = vpop.xlane.xlu0 %936
    %938 = vmax.xlane.f32.xlu0 %v913
    %v939 = vpop.xlane.xlu0 %938
    %940 = vmax.xlane.f32.xlu0 %v914
    %v941 = vpop.xlane.xlu0 %940
    %942 = vmax.xlane.f32.xlu0 %v915
    %v943 = vpop.xlane.xlu0 %942
    %944 = vmax.xlane.f32.xlu0 %v916
    %v945 = vpop.xlane.xlu0 %944
    %946 = vmax.xlane.f32.xlu0 %v917
    %v947 = vpop.xlane.xlu0 %946
    %948 = vmax.xlane.f32.xlu0 %v918
    %v949 = vpop.xlane.xlu0 %948
    %950 = vmax.xlane.f32.xlu0 %v919
    %v951 = vpop.xlane.xlu0 %950
    %v952 = vsub.f32 %v904, %v921
    %v953 = vsub.f32 %v905, %v923
    %v954 = vsub.f32 %v906, %v925
    %v955 = vsub.f32 %v907, %v927
    %v956 = vsub.f32 %v908, %v929
    %v957 = vsub.f32 %v909, %v931
    %v958 = vsub.f32 %v910, %v933
    %v959 = vsub.f32 %v911, %v935
    %v960 = vsub.f32 %v912, %v937
    %v961 = vsub.f32 %v913, %v939
    %v962 = vsub.f32 %v914, %v941
    %v963 = vsub.f32 %v915, %v943
    %v964 = vsub.f32 %v916, %v945
    %v965 = vsub.f32 %v917, %v947
    %v966 = vsub.f32 %v918, %v949
    %v967 = vsub.f32 %v919, %v951
    %v968 = vmul.f32 %v952, 1.442695
    %v969 = vpow.pop %v968
    %v970 = vmul.f32 %v953, 1.442695
    %v971 = vpow.pop %v970
    %v972 = vmul.f32 %v954, 1.442695
    %v973 = vpow.pop %v972
    %v974 = vmul.f32 %v955, 1.442695
    %v975 = vpow.pop %v974
    %v976 = vmul.f32 %v956, 1.442695
    %v977 = vpow.pop %v976
    %v978 = vmul.f32 %v957, 1.442695
    %v979 = vpow.pop %v978
    %v980 = vmul.f32 %v958, 1.442695
    %v981 = vpow.pop %v980
    %v982 = vmul.f32 %v959, 1.442695
    %v983 = vpow.pop %v982
    %v984 = vmul.f32 %v960, 1.442695
    %v985 = vpow.pop %v984
    %v986 = vmul.f32 %v961, 1.442695
    %v987 = vpow.pop %v986
    %v988 = vmul.f32 %v962, 1.442695
    %v989 = vpow.pop %v988
    %v990 = vmul.f32 %v963, 1.442695
    %v991 = vpow.pop %v990
    %v992 = vmul.f32 %v964, 1.442695
    %v993 = vpow.pop %v992
    %v994 = vmul.f32 %v965, 1.442695
    %v995 = vpow.pop %v994
    %v996 = vmul.f32 %v966, 1.442695
    %v997 = vpow.pop %v996
    %v998 = vmul.f32 %v967, 1.442695
    %v999 = vpow.pop %v998
    %1000 = vadd.xlane.f32.xlu0 %v969
    %v1001 = vpop.xlane.xlu0 %1000
    %1002 = vadd.xlane.f32.xlu0 %v971
    %v1003 = vpop.xlane.xlu0 %1002
    %1004 = vadd.xlane.f32.xlu0 %v973
    %v1005 = vpop.xlane.xlu0 %1004
    %1006 = vadd.xlane.f32.xlu0 %v975
    %v1007 = vpop.xlane.xlu0 %1006
    %1008 = vadd.xlane.f32.xlu0 %v977
    %v1009 = vpop.xlane.xlu0 %1008
    %1010 = vadd.xlane.f32.xlu0 %v979
    %v1011 = vpop.xlane.xlu0 %1010
    %1012 = vadd.xlane.f32.xlu0 %v981
    %v1013 = vpop.xlane.xlu0 %1012
    %1014 = vadd.xlane.f32.xlu0 %v983
    %v1015 = vpop.xlane.xlu0 %1014
    %1016 = vadd.xlane.f32.xlu0 %v985
    %v1017 = vpop.xlane.xlu0 %1016
    %1018 = vadd.xlane.f32.xlu0 %v987
    %v1019 = vpop.xlane.xlu0 %1018
    %1020 = vadd.xlane.f32.xlu0 %v989
    %v1021 = vpop.xlane.xlu0 %1020
    %1022 = vadd.xlane.f32.xlu0 %v991
    %v1023 = vpop.xlane.xlu0 %1022
    %1024 = vadd.xlane.f32.xlu0 %v993
    %v1025 = vpop.xlane.xlu0 %1024
    %1026 = vadd.xlane.f32.xlu0 %v995
    %v1027 = vpop.xlane.xlu0 %1026
    %1028 = vadd.xlane.f32.xlu0 %v997
    %v1029 = vpop.xlane.xlu0 %1028
    %1030 = vadd.xlane.f32.xlu0 %v999
    %v1031 = vpop.xlane.xlu0 %1030
    %v1032 = vlog2.pop %v1001
    %v1033 = vmul.f32 %v1032, 0.6931472
    %v1034 = vlog2.pop %v1003
    %v1035 = vmul.f32 %v1034, 0.6931472
    %v1036 = vlog2.pop %v1005
    %v1037 = vmul.f32 %v1036, 0.6931472
    %v1038 = vlog2.pop %v1007
    %v1039 = vmul.f32 %v1038, 0.6931472
    %v1040 = vlog2.pop %v1009
    %v1041 = vmul.f32 %v1040, 0.6931472
    %v1042 = vlog2.pop %v1011
    %v1043 = vmul.f32 %v1042, 0.6931472
    %v1044 = vlog2.pop %v1013
    %v1045 = vmul.f32 %v1044, 0.6931472
    %v1046 = vlog2.pop %v1015
    %v1047 = vmul.f32 %v1046, 0.6931472
    %v1048 = vlog2.pop %v1017
    %v1049 = vmul.f32 %v1048, 0.6931472
    %v1050 = vlog2.pop %v1019
    %v1051 = vmul.f32 %v1050, 0.6931472
    %v1052 = vlog2.pop %v1021
    %v1053 = vmul.f32 %v1052, 0.6931472
    %v1054 = vlog2.pop %v1023
    %v1055 = vmul.f32 %v1054, 0.6931472
    %v1056 = vlog2.pop %v1025
    %v1057 = vmul.f32 %v1056, 0.6931472
    %v1058 = vlog2.pop %v1027
    %v1059 = vmul.f32 %v1058, 0.6931472
    %v1060 = vlog2.pop %v1029
    %v1061 = vmul.f32 %v1060, 0.6931472
    %v1062 = vlog2.pop %v1031
    %v1063 = vmul.f32 %v1062, 0.6931472
    %v1064 = vsub.f32 %v952, %v1033
    %v1065 = vsub.f32 %v953, %v1035
    %v1066 = vsub.f32 %v954, %v1037
    %v1067 = vsub.f32 %v955, %v1039
    %v1068 = vsub.f32 %v956, %v1041
    %v1069 = vsub.f32 %v957, %v1043
    %v1070 = vsub.f32 %v958, %v1045
    %v1071 = vsub.f32 %v959, %v1047
    %v1072 = vsub.f32 %v960, %v1049
    %v1073 = vsub.f32 %v961, %v1051
    %v1074 = vsub.f32 %v962, %v1053
    %v1075 = vsub.f32 %v963, %v1055
    %v1076 = vsub.f32 %v964, %v1057
    %v1077 = vsub.f32 %v965, %v1059
    %v1078 = vsub.f32 %v966, %v1061
    %v1079 = vsub.f32 %v967, %v1063
    %1080 = vst [vmem:[#allocation7] sm:$0xff] %v1064
    %1081 = vst [vmem:[#allocation7 + $0x8] sm:$0xff] %v1065
    %1082 = vst [vmem:[#allocation7 + $0x10] sm:$0xff] %v1066
    %1083 = vst [vmem:[#allocation7 + $0x18] sm:$0xff] %v1067
    %1084 = vst [vmem:[#allocation7 + $0x20] sm:$0xff] %v1068
    %1085 = vst [vmem:[#allocation7 + $0x28] sm:$0xff] %v1069
    %1086 = vst [vmem:[#allocation7 + $0x30] sm:$0xff] %v1070
    %1087 = vst [vmem:[#allocation7 + $0x38] sm:$0xff] %v1071
    %1088 = vst [vmem:[#allocation7 + $0x40] sm:$0xff] %v1072
    %1089 = vst [vmem:[#allocation7 + $0x48] sm:$0xff] %v1073
    %1090 = vst [vmem:[#allocation7 + $0x50] sm:$0xff] %v1074
    %1091 = vst [vmem:[#allocation7 + $0x58] sm:$0xff] %v1075
    %1092 = vst [vmem:[#allocation7 + $0x60] sm:$0xff] %v1076
    %1093 = vst [vmem:[#allocation7 + $0x68] sm:$0xff] %v1077
    %1094 = vst [vmem:[#allocation7 + $0x70] sm:$0xff] %v1078
    %1095 = vst [vmem:[#allocation7 + $0x78] sm:$0xff] %v1079
    // Predicated region
    $region42: #{tpu_custom_call.1} parent=1 // pred_check
      _
    $region43: #{tpu_custom_call.1} parent=1 // pred_check_branch
      %1097 = sbr.rel (0) target = $region45
    $region44: #{tpu_custom_call.1} parent=1 // pred_region
      %s1099 = ssub.s32 2048, 2048
      %1100 = vsyncadd [#allocation4], %s1099
      %s1101 = sshll.u32 [#allocation7], 4
      %s1102 = int_to_ptr.vmem [resolvable:$true] %s1101
      %1107 = dma.vmem_to_hbm [thread:$0]  %s1102, 2048, %s8, [#allocation4], 128, 128, 8
    $region45: #{tpu_custom_call.1} parent=1 // pred_fallthru
      _
    // Predicated region
    $region46: #{tpu_custom_call.1} parent=1 // pred_check
      _
    $region47: #{tpu_custom_call.1} parent=1 // pred_check_branch
      %1109 = sbr.rel (0) target = $region49
    $region48: #{tpu_custom_call.1} parent=1 // pred_region
      %1110 = dma.done [#allocation4], 2048
    $region49: #{tpu_custom_call.1} parent=1 // pred_fallthru
      _
    %1111 = vsyncpa [#allocation3], 1
    %1112 = vsyncpa [#allocation6], 1
    %1113 = vsyncpa [#allocation4], 1

</llo_original>
